<compile_context>
chip_gen: v7x
topology: tpu7x:2x2x1
jax: 0.10.0
libtpu: 0.0.40
codegen_flags: <defaults>
</compile_context>

<pallas_src>
import functools

import jax
import jax.numpy as jnp
from jax import lax
from jax.experimental import pallas as pl
from jax.experimental.pallas import tpu as pltpu


def _round_up(x, m):
    return ((x + m - 1) // m) * m


def _gppt_kernel(a_ref, h_ref, w_ref, invdeg_ref, out_ref, fea_ref, acc_ref, *,
                 center_num, n_classes, tk, h_pinned, epi_chunk):
    """Grid = (row tiles of nodes, reduction tiles over A columns)."""
    k = pl.program_id(1)

    a = a_ref[...]
    if h_pinned:
        off = pl.multiple_of(k * tk, tk)
        h = h_ref[pl.ds(off, tk), :]          # full h resident in VMEM
    else:
        h = h_ref[...]                        # streamed (tk, Dp) tile

    # SimpleMeanConv partial sum (un-normalized): A_tile @ h_tile on the MXU.
    # A/h may be bf16; accumulation is always f32 in the VMEM scratch.
    partial = jnp.dot(a, h, preferred_element_type=jnp.float32)

    @pl.when(k == 0)
    def _init():
        acc_ref[...] = partial                # direct write, no zero + RMW

    @pl.when(k > 0)
    def _accum():
        acc_ref[...] += partial

    @pl.when(k == pl.num_programs(1) - 1)
    def _finalize():
        wp = out_ref.shape[1]
        ck = center_num * n_classes
        w = w_ref[...]
        col = lax.broadcasted_iota(jnp.int32, (epi_chunk, wp), 1)
        struct_mask = (col >= ck) & (col < ck + center_num)
        n_chunks = acc_ref.shape[0] // epi_chunk

        def body(c, carry):
            r0 = pl.multiple_of(c * epi_chunk, epi_chunk)
            rows = pl.ds(r0, epi_chunk)

            # Mean aggregation: accumulated sum * 1/(deg + 1), per row.
            h_agg = acc_ref[rows, :] * invdeg_ref[rows, :]
            fea_ref[rows, :] = h_agg          # self.fea (lane-dense store)

            # ONE fused MXU pass covering StructureToken + all TaskTokens:
            # [chunk, Dp] @ [Dp, Wp], layout [task C*K | struct C | pad].
            logits = jnp.dot(h_agg, w, preferred_element_type=jnp.float32)

            # torch.argmax over StructureToken columns (first-maximal index).
            s = jnp.where(struct_mask, logits, -jnp.inf)
            mx = jnp.max(s, axis=1, keepdims=True)
            idx = jnp.min(jnp.where((s == mx) & struct_mask, col - ck, center_num),
                          axis=1, keepdims=True)          # [chunk, 1] in [0, C)

            # Keep only the selected cluster's K task logits; zero the rest.
            # Single full-width select, lane-dense [chunk, Wp] store.
            task_mask = (col >= idx * n_classes) & (col < (idx + 1) * n_classes)
            out_ref[rows, :] = jnp.where(task_mask, logits, 0.0)
            return carry

        # Chunked epilogue keeps logits / iota / masks within the 64-vreg file.
        lax.fori_loop(0, n_chunks, body, 0, unroll=True)


def gppt_forward(h, edge_index, w_struct, w_task, *, adj_dtype=jnp.bfloat16):
    """h: [N, D] f32, edge_index: [2, E] int32,
    w_struct: [C, D] (StructureToken), w_task: [C, K, D] (TaskTokens)."""
    n, d = h.shape
    center_num, n_classes, _ = w_task.shape
    ck = center_num * n_classes

    # ---- tile plan: big tiles for the mem-bound A stream, reduction axis last ----
    np_pad = _round_up(n, 128)
    if np_pad <= 1024:
        tm = tk = np_pad                      # single grid step
    else:
        np_pad = _round_up(n, 512)
        tm = 512
        tk = 1024 if np_pad % 1024 == 0 else 512
    dp = _round_up(d, 128)
    wp = _round_up(ck + center_num, 128)
    epi_chunk = 128                           # epilogue rows per unrolled step

    adj_itemsize = jnp.dtype(adj_dtype).itemsize
    h_pinned = np_pad * dp * adj_itemsize <= 8 * 1024 * 1024

    # ---- glue: raw adjacency counts with self-loops (ONE O(N^2) write pass).
    # Row normalization (aggr='mean') is folded into the kernel via inv_deg,
    # so no +eye / row-sum / divide passes over the dense matrix here.
    src = edge_index[0].astype(jnp.int32)
    dst = edge_index[1].astype(jnp.int32)
    loop = jnp.arange(np_pad, dtype=jnp.int32)
    src_all = jnp.concatenate([src, loop])
    dst_all = jnp.concatenate([dst, loop])
    a = jnp.zeros((np_pad, np_pad), adj_dtype).at[dst_all, src_all].add(
        jnp.ones(src_all.shape, adj_dtype))
    deg = jnp.zeros((np_pad,), jnp.float32).at[dst_all].add(1.0)
    inv_deg = (1.0 / deg).reshape(np_pad, 1)  # self-loops keep deg >= 1 everywhere

    # Node features pre-cast to the streaming dtype, lane-padded [Np, Dp].
    h_pad = jnp.zeros((np_pad, dp), adj_dtype).at[:n, :d].set(h.astype(adj_dtype))

    # Fused, pre-transposed, lane-padded weights: [task C*K | struct C | pad].
    w_all = jnp.zeros((dp, wp), jnp.float32)
    w_all = w_all.at[:d, :ck].set(jnp.reshape(w_task, (ck, d)).T)
    w_all = w_all.at[:d, ck:ck + center_num].set(w_struct.T)

    grid = (np_pad // tm, np_pad // tk)

    if h_pinned:
        h_spec = pl.BlockSpec((np_pad, dp), lambda i, k: (0, 0))   # resident once
    else:
        h_spec = pl.BlockSpec((tk, dp), lambda i, k: (k, 0))       # streamed

    # ---- VMEM footprint (double-buffered) -> tight per-call limit (v7x: 64 MiB) ----
    a_bytes = 2 * tm * tk * adj_itemsize
    h_bytes = (2 * np_pad * dp * adj_itemsize) if h_pinned else (2 * tk * dp * adj_itemsize)
    w_bytes = 2 * dp * wp * 4
    invdeg_bytes = 2 * tm * 128 * 4           # lane-padded
    out_bytes = 2 * (tm * wp * 4 + tm * dp * 4)
    acc_bytes = tm * dp * 4
    footprint = a_bytes + h_bytes + w_bytes + invdeg_bytes + out_bytes + acc_bytes
    vmem_limit = int(min(max(footprint + (4 << 20), 16 << 20), 56 << 20))

    h_refetch = 1 if h_pinned else (np_pad // tm)
    flops = int(2 * np_pad * np_pad * dp + 2 * np_pad * dp * wp)
    bytes_accessed = int(np_pad * np_pad * adj_itemsize                 # A (dominant)
                         + np_pad * dp * adj_itemsize * h_refetch       # h
                         + dp * wp * 4 + np_pad * 4                     # weights + inv_deg
                         + np_pad * wp * 4 + np_pad * dp * 4)           # out + fea

    kernel = functools.partial(_gppt_kernel, center_num=center_num,
                               n_classes=n_classes, tk=tk, h_pinned=h_pinned,
                               epi_chunk=epi_chunk)

    out_pad, fea_pad = pl.pallas_call(
        kernel,
        out_shape=(jax.ShapeDtypeStruct((np_pad, wp), jnp.float32),
                   jax.ShapeDtypeStruct((np_pad, dp), jnp.float32)),
        grid_spec=pltpu.PrefetchScalarGridSpec(
            num_scalar_prefetch=0,
            grid=grid,
            in_specs=[
                pl.BlockSpec((tm, tk), lambda i, k: (i, k)),     # A tile
                h_spec,                                          # h (pinned/streamed)
                pl.BlockSpec((dp, wp), lambda i, k: (0, 0)),     # fused weights
                pl.BlockSpec((tm, 1), lambda i, k: (i, 0)),      # 1 / (deg + 1)
            ],
            out_specs=(
                pl.BlockSpec((tm, wp), lambda i, k: (i, 0)),     # masked task logits
                pl.BlockSpec((tm, dp), lambda i, k: (i, 0)),     # fea (h_agg)
            ),
            scratch_shapes=[pltpu.VMEM((tm, dp), jnp.float32)],  # h_agg accumulator
        ),
        compiler_params=pltpu.CompilerParams(
            dimension_semantics=("parallel", "arbitrary"),
            vmem_limit_bytes=vmem_limit,
        ),
        cost_estimate=pl.CostEstimate(flops=flops, transcendentals=0,
                                      bytes_accessed=bytes_accessed),
    )(a, h_pad, w_all, inv_deg)

    # Layout plumbing only: exactly one K-wide group per row is nonzero.
    out = out_pad[:n, :ck].reshape(n, center_num, n_classes).sum(axis=1)
    fea = fea_pad[:n, :d]
    return out, fea


def _reference(h, edge_index, w_struct, w_task, adj_dtype):
    """Plain-JAX reference mirroring the torch semantics and the kernel's
    declared quantization of the A / h streams (f32 accumulation)."""
    n = h.shape[0]
    h_q = h.astype(adj_dtype).astype(jnp.float32)
    src, dst = edge_index[0], edge_index[1]
    counts = (jnp.zeros((n, n), jnp.float32).at[dst, src].add(1.0)
              + jnp.eye(n, dtype=jnp.float32))
    deg = counts.sum(axis=1, keepdims=True)
    h_agg = jnp.matmul(counts, h_q, precision="highest") / deg
    s = jnp.matmul(h_agg, w_struct.T, precision="highest")
    idx = jnp.argmax(s, axis=1)
    logits_all = jnp.einsum('nd,kcd->nkc', h_agg, w_task, precision="highest")
    out = jnp.take_along_axis(logits_all, idx[:, None, None], axis=1)[:, 0, :]
    s_sorted = jnp.sort(s, axis=1)
    gap = s_sorted[:, -1] - s_sorted[:, -2]          # argmax stability margin
    return out, h_agg, gap


def _check(h, edge_index, w_struct, w_task, fea_tol, out_tol,
           adj_dtype=jnp.bfloat16):
    out, fea = gppt_forward(h, edge_index, w_struct, w_task, adj_dtype=adj_dtype)
    jax.block_until_ready((out, fea))

    ref_out, ref_fea, gap = _reference(h, edge_index, w_struct, w_task, adj_dtype)
    assert out.shape == ref_out.shape and fea.shape == ref_fea.shape
    assert bool(jnp.all(jnp.isfinite(out))) and bool(jnp.all(jnp.isfinite(fea)))
    assert jnp.allclose(fea, ref_fea, atol=fea_tol, rtol=fea_tol)

    # Only compare rows whose argmax is numerically well separated (avoids
    # spurious failures from summation-order ties); require that the vast
    # majority of rows are actually checked.
    stable = (gap > 1e-3)[:, None]
    assert float(jnp.mean(stable.astype(jnp.float32))) > 0.5
    assert jnp.allclose(jnp.where(stable, out, ref_out), ref_out,
                        atol=out_tol, rtol=out_tol)


if __name__ == "__main__":
    key = jax.random.PRNGKey(0)

    # --- test 1: small single-tile grid, full-f32 streaming ---
    N, D, C, K, E = 64, 32, 4, 8, 96
    k1, k2, k3, k4, key = jax.random.split(key, 5)
    h = jax.random.normal(k1, (N, D), dtype=jnp.float32)
    edge_index = jax.random.randint(k2, (2, E), 0, N, dtype=jnp.int32)
    w_struct = jax.random.uniform(k3, (C, D), jnp.float32, -1.0 / D ** 0.5, 1.0 / D ** 0.5)
    w_task = jax.random.uniform(k4, (C, K, D), jnp.float32, -1.0 / D ** 0.5, 1.0 / D ** 0.5)
    _check(h, edge_index, w_struct, w_task, fea_tol=1e-4, out_tol=1e-4,
           adj_dtype=jnp.float32)

    # --- test 2: mid size, default bf16 A/h streams, single reduction step ---
    N, D, C, K, E = 600, 48, 5, 6, 2400
    k1, k2, k3, k4, key = jax.random.split(key, 5)
    h = jax.random.normal(k1, (N, D), dtype=jnp.float32)
    edge_index = jax.random.randint(k2, (2, E), 0, N, dtype=jnp.int32)
    w_struct = jax.random.uniform(k3, (C, D), jnp.float32, -1.0 / D ** 0.5, 1.0 / D ** 0.5)
    w_task = jax.random.uniform(k4, (C, K, D), jnp.float32, -1.0 / D ** 0.5, 1.0 / D ** 0.5)
    _check(h, edge_index, w_struct, w_task, fea_tol=1e-3, out_tol=1e-3)

    # --- test 3: multi-tile grid (row-parallel x A-reduction accumulation),
    #     pinned-h pl.ds slicing and chunked finalize epilogue ---
    N, D, C, K, E = 1500, 64, 6, 10, 6000
    k1, k2, k3, k4, key = jax.random.split(key, 5)
    h = jax.random.normal(k1, (N, D), dtype=jnp.float32)
    edge_index = jax.random.randint(k2, (2, E), 0, N, dtype=jnp.int32)
    w_struct = jax.random.uniform(k3, (C, D), jnp.float32, -1.0 / D ** 0.5, 1.0 / D ** 0.5)
    w_task = jax.random.uniform(k4, (C, K, D), jnp.float32, -1.0 / D ** 0.5, 1.0 / D ** 0.5)
    _check(h, edge_index, w_struct, w_task, fea_tol=1e-3, out_tol=1e-3)

    print("KERNEL_OK")
</pallas_src>

<mosaic_0001>
module attributes {stable_mosaic.version = 11 : i64} {
  func.func @_gppt_kernel(%arg0: i32, %arg1: i32, %arg2: memref<128x128xf32, #tpu.memory_space<vmem>>, %arg3: memref<128x128xf32, #tpu.memory_space<vmem>>, %arg4: memref<128x128xf32, #tpu.memory_space<vmem>>, %arg5: memref<128x1xf32, #tpu.memory_space<vmem>>, %arg6: memref<128x128xf32, #tpu.memory_space<vmem>>, %arg7: memref<128x128xf32, #tpu.memory_space<vmem>>, %arg8: memref<128x128xf32, #tpu.memory_space<vmem>>) attributes {dimension_semantics = [#tpu.dimension_semantics<parallel>, #tpu.dimension_semantics<arbitrary>], iteration_bounds = array<i64: 1, 1>, scalar_prefetch = 0 : i64, scratch_operands = 1 : i64, tpu.core_type = #tpu.core_type<tc>, window_params = [{transform_indices = @transform_0, window_bounds = array<i64: 128, 128>}, {pipeline_mode = #tpu.pipeline_mode<synchronous>, transform_indices = @transform_1, window_bounds = array<i64: 128, 128>}, {pipeline_mode = #tpu.pipeline_mode<synchronous>, transform_indices = @transform_2, window_bounds = array<i64: 128, 128>}, {transform_indices = @transform_3, window_bounds = array<i64: 128, 1>}, {transform_indices = @transform_4, window_bounds = array<i64: 128, 128>}, {transform_indices = @transform_5, window_bounds = array<i64: 128, 128>}]} {
    %c0 = arith.constant 0 : index
    %c0_0 = arith.constant 0 : index
    %0 = vector.load %arg2[%c0, %c0_0] : memref<128x128xf32, #tpu.memory_space<vmem>>, vector<128x128xf32>
    %c128_i32 = arith.constant 128 : i32
    %1 = arith.muli %arg1, %c128_i32 : i32
    %2 = tpu.assume_multiple %1, 128 : i32
    %3 = arith.index_cast %2 : i32 to index
    %c0_1 = arith.constant 0 : index
    %4 = vector.load %arg3[%3, %c0_1] : memref<128x128xf32, #tpu.memory_space<vmem>>, vector<128x128xf32>
    %cst = arith.constant dense<0.000000e+00> : vector<128x128xf32>
    %5 = tpu.matmul %0, %4, %cst {dimension_numbers = #tpu.dot_dimension_numbers<[1], [0], [0], [1], [0, 0, 1, 1], [], []>} : vector<128x128xf32>, vector<128x128xf32>, vector<128x128xf32> -> vector<128x128xf32>
    %c0_i32 = arith.constant 0 : i32
    %6 = arith.cmpi eq, %arg1, %c0_i32 : i32
    %7 = arith.extui %6 : i1 to i32
    %c0_i32_2 = arith.constant 0 : i32
    %8 = arith.cmpi ne, %7, %c0_i32_2 : i32
    scf.if %8 {
      %c0_7 = arith.constant 0 : index
      %c0_8 = arith.constant 0 : index
      %15 = vector.load %arg8[%c0_7, %c0_8] : memref<128x128xf32, #tpu.memory_space<vmem>>, vector<128x128xf32>
      tpu.vector_store %arg8[%c0_7, %c0_8], %5 {strides = array<i32>} : memref<128x128xf32, #tpu.memory_space<vmem>>, vector<128x128xf32>,
    } else {
    }
    %c0_i32_3 = arith.constant 0 : i32
    %9 = arith.cmpi sgt, %arg1, %c0_i32_3 : i32
    %10 = arith.extui %9 : i1 to i32
    %c0_i32_4 = arith.constant 0 : i32
    %11 = arith.cmpi ne, %10, %c0_i32_4 : i32
    scf.if %11 {
      %c0_7 = arith.constant 0 : index
      %c0_8 = arith.constant 0 : index
      %15 = vector.load %arg8[%c0_7, %c0_8] : memref<128x128xf32, #tpu.memory_space<vmem>>, vector<128x128xf32>
      %16 = arith.addf %15, %5 : vector<128x128xf32>
      %c0_9 = arith.constant 0 : index
      %c0_10 = arith.constant 0 : index
      %17 = vector.load %arg8[%c0_9, %c0_10] : memref<128x128xf32, #tpu.memory_space<vmem>>, vector<128x128xf32>
      tpu.vector_store %arg8[%c0_9, %c0_10], %16 {strides = array<i32>} : memref<128x128xf32, #tpu.memory_space<vmem>>, vector<128x128xf32>,
    } else {
    }
    %c0_i32_5 = arith.constant 0 : i32
    %12 = arith.cmpi eq, %arg1, %c0_i32_5 : i32
    %13 = arith.extui %12 : i1 to i32
    %c0_i32_6 = arith.constant 0 : i32
    %14 = arith.cmpi ne, %13, %c0_i32_6 : i32
    scf.if %14 {
      %c0_7 = arith.constant 0 : index
      %c0_8 = arith.constant 0 : index
      %15 = vector.load %arg4[%c0_7, %c0_8] : memref<128x128xf32, #tpu.memory_space<vmem>>, vector<128x128xf32>
      %16 = tpu.iota {dimensions = array<i32: 1>} : vector<128x128xi32>
      %c32_i32 = arith.constant 32 : i32
      %17 = vector.broadcast %c32_i32 : i32 to vector<128x128xi32>
      %18 = arith.cmpi sge, %16, %17 : vector<128x128xi32>
      %c36_i32 = arith.constant 36 : i32
      %19 = vector.broadcast %c36_i32 : i32 to vector<128x128xi32>
      %20 = arith.cmpi slt, %16, %19 : vector<128x128xi32>
      %21 = arith.andi %18, %20 : vector<128x128xi1>
      %c0_i32_9 = arith.constant 0 : i32
      %c128_i32_10 = arith.constant 128 : i32
      %22 = arith.muli %c0_i32_9, %c128_i32_10 : i32
      %23 = tpu.assume_multiple %22, 128 : i32
      %24 = arith.index_cast %23 : i32 to index
      %c0_11 = arith.constant 0 : index
      %25 = vector.load %arg8[%24, %c0_11] : memref<128x128xf32, #tpu.memory_space<vmem>>, vector<128x128xf32>
      %26 = arith.index_cast %23 : i32 to index
      %c0_12 = arith.constant 0 : index
      %27 = vector.load %arg5[%26, %c0_12] : memref<128x1xf32, #tpu.memory_space<vmem>>, vector<128x1xf32>
      %28 = vector.broadcast %27 : vector<128x1xf32> to vector<128x128xf32>
      %29 = arith.mulf %25, %28 : vector<128x128xf32>
      %30 = arith.index_cast %23 : i32 to index
      %c0_13 = arith.constant 0 : index
      %31 = vector.load %arg7[%30, %c0_13] : memref<128x128xf32, #tpu.memory_space<vmem>>, vector<128x128xf32>
      tpu.vector_store %arg7[%30, %c0_13], %29 {strides = array<i32>} : memref<128x128xf32, #tpu.memory_space<vmem>>, vector<128x128xf32>,
      %cst_14 = arith.constant dense<0.000000e+00> : vector<128x128xf32>
      %32 = tpu.matmul %29, %15, %cst_14 {dimension_numbers = #tpu.dot_dimension_numbers<[1], [0], [0], [1], [0, 0, 1, 1], [], []>} : vector<128x128xf32>, vector<128x128xf32>, vector<128x128xf32> -> vector<128x128xf32>
      %cst_15 = arith.constant 0xFF800000 : f32
      %33 = vector.broadcast %cst_15 : f32 to vector<128x128xf32>
      %34 = arith.select %21, %32, %33 : vector<128x128xi1>, vector<128x128xf32>
      %cst_16 = arith.constant dense<0xFF800000> : vector<128xf32>
      %35 = vector.multi_reduction <maximumf>, %34, %cst_16 [1] : vector<128x128xf32> to vector<128xf32>
      %36 = vector.shape_cast %35 : vector<128xf32> to vector<128x1xf32>
      %37 = vector.broadcast %36 : vector<128x1xf32> to vector<128x128xf32>
      %38 = arith.cmpf oeq, %34, %37 : vector<128x128xf32>
      %39 = arith.andi %38, %21 : vector<128x128xi1>
      %c32_i32_17 = arith.constant 32 : i32
      %40 = vector.broadcast %c32_i32_17 : i32 to vector<128x128xi32>
      %41 = arith.subi %16, %40 : vector<128x128xi32>
      %c4_i32 = arith.constant 4 : i32
      %42 = vector.broadcast %c4_i32 : i32 to vector<128x128xi32>
      %43 = arith.select %39, %41, %42 : vector<128x128xi1>, vector<128x128xi32>
      %cst_18 = arith.constant dense<2147483647> : vector<128xi32>
      %44 = vector.multi_reduction <minsi>, %43, %cst_18 [1] : vector<128x128xi32> to vector<128xi32>
      %45 = vector.shape_cast %44 : vector<128xi32> to vector<128x1xi32>
      %c8_i32 = arith.constant 8 : i32
      %46 = vector.broadcast %c8_i32 : i32 to vector<128x1xi32>
      %47 = arith.muli %45, %46 : vector<128x1xi32>
      %48 = vector.broadcast %47 : vector<128x1xi32> to vector<128x128xi32>
      %49 = arith.cmpi sge, %16, %48 : vector<128x128xi32>
      %c1_i32 = arith.constant 1 : i32
      %50 = vector.broadcast %c1_i32 : i32 to vector<128x1xi32>
      %51 = arith.addi %45, %50 : vector<128x1xi32>
      %c8_i32_19 = arith.constant 8 : i32
      %52 = vector.broadcast %c8_i32_19 : i32 to vector<128x1xi32>
      %53 = arith.muli %51, %52 : vector<128x1xi32>
      %54 = vector.broadcast %53 : vector<128x1xi32> to vector<128x128xi32>
      %55 = arith.cmpi slt, %16, %54 : vector<128x128xi32>
      %56 = arith.andi %49, %55 : vector<128x128xi1>
      %cst_20 = arith.constant 0.000000e+00 : f32
      %57 = vector.broadcast %cst_20 : f32 to vector<128x128xf32>
      %58 = arith.select %56, %32, %57 : vector<128x128xi1>, vector<128x128xf32>
      %59 = arith.index_cast %23 : i32 to index
      %c0_21 = arith.constant 0 : index
      %60 = vector.load %arg6[%59, %c0_21] : memref<128x128xf32, #tpu.memory_space<vmem>>, vector<128x128xf32>
      tpu.vector_store %arg6[%59, %c0_21], %58 {strides = array<i32>} : memref<128x128xf32, #tpu.memory_space<vmem>>, vector<128x128xf32>,
      %c1_i32_22 = arith.constant 1 : i32
    } else {
    }
    return
  }
  func.func @transform_0(%arg0: i32, %arg1: i32) -> (i32, i32) {
    %c0_i32 = arith.constant 0 : i32
    return %arg0, %arg1 : i32, i32
  }
  func.func @transform_1(%arg0: i32, %arg1: i32) -> (i32, i32) {
    %c0_i32 = arith.constant 0 : i32
    %c0_i32_0 = arith.constant 0 : i32
    %c0_i32_1 = arith.constant 0 : i32
    return %c0_i32, %c0_i32_0 : i32, i32
  }
  func.func @transform_2(%arg0: i32, %arg1: i32) -> (i32, i32) {
    %c0_i32 = arith.constant 0 : i32
    %c0_i32_0 = arith.constant 0 : i32
    %c0_i32_1 = arith.constant 0 : i32
    return %c0_i32, %c0_i32_0 : i32, i32
  }
  func.func @transform_3(%arg0: i32, %arg1: i32) -> (i32, i32) {
    %c0_i32 = arith.constant 0 : i32
    %c0_i32_0 = arith.constant 0 : i32
    return %arg0, %c0_i32 : i32, i32
  }
  func.func @transform_4(%arg0: i32, %arg1: i32) -> (i32, i32) {
    %c0_i32 = arith.constant 0 : i32
    %c0_i32_0 = arith.constant 0 : i32
    return %arg0, %c0_i32 : i32, i32
  }
  func.func @transform_5(%arg0: i32, %arg1: i32) -> (i32, i32) {
    %c0_i32 = arith.constant 0 : i32
    %c0_i32_0 = arith.constant 0 : i32
    return %arg0, %c0_i32 : i32, i32
  }
}

</mosaic_0001>

<llo_original>
// kernel: tpu_custom_call.1
$region0: #{tpu_custom_call.1}
  #allocation0 [shape = 'u32[]', space=smem, size = 0x4, offset = 0x4, fixed_abs, tag = 'smem constant byte address 0x4 - core index']
  #allocation1 [shape = 'u32[144,128]{1,0:T(1,128)}', space=vmem, size = 0x12000, scoped, tag = 'internal scratch']
  #allocation2 [shape = 'f32[128,128]{1,0:T(8,128)}', space=vmem, size = 0x10000, scoped, tag = 'scratch operand']
  %s0 = inlined_call_operand.vmem [shape: f32[128,128], index: 0, kind: input, shape index: {}]
  %s1 = inlined_call_operand.hbm [shape: f32[128,128], index: 1, kind: input, shape index: {}]
  %s2 = inlined_call_operand.hbm [shape: f32[128,128], index: 2, kind: input, shape index: {}]
  %s3 = inlined_call_operand.vmem [shape: f32[128,1], index: 3, kind: input, shape index: {}]
  %s4 = inlined_call_operand.hbm [shape: f32[128,128], index: 4, kind: output, shape index: {0}]
  %s5 = inlined_call_operand.hbm [shape: f32[128,128], index: 5, kind: output, shape index: {1}]
  %6 = xla_tuple %s4, %s5
  %s7 = sld [smem:[#allocation0]]
  $region54: #{tpu_custom_call.1} parent=0
    _
  %s9 = ssub.s32 1, %s7
  %s10 = scalar_select 0, %s9, %s7
  $region1: #{tpu_custom_call.1} parent=0
    #allocation3 [shape = 'u8[65536]{0}', space=vmem, size = 0x10000, scoped, tag = 'input window, operand 1, single buffered']
    #allocation4 [shape = 's32[1]{0}', space=sflag, size = 0x4, scoped, tag = 'scoped memory for tpu_custom_call.1']
    #allocation5 [shape = 's32[1]{0}', space=sflag, size = 0x4, scoped, tag = 'scoped memory for tpu_custom_call.1']
    #allocation6 [shape = 'u8[65536]{0}', space=vmem, size = 0x10000, scoped, tag = 'input window, operand 2, single buffered']
    #allocation7 [shape = 's32[1]{0}', space=sflag, size = 0x4, scoped, tag = 'scoped memory for tpu_custom_call.1']
    #allocation8 [shape = 'u8[65536]{0}', space=vmem, size = 0x10000, scoped, tag = 'output window, operand 0, single buffered']
    #allocation9 [shape = 'u8[65536]{0}', space=vmem, size = 0x10000, scoped, tag = 'output window, operand 1, single buffered']
    #allocation10 [shape = 's32[1]{0}', space=sflag, size = 0x4, scoped, tag = 'scoped memory for tpu_custom_call.1']
    %11 = vsyncpa [#allocation4], 0
    %12 = vsyncpa [#allocation7], 0
    %13 = vsyncpa [#allocation5], 0
    %14 = vsyncpa [#allocation10], 0
    // Predicated region
    $region2: #{tpu_custom_call.1} parent=1 // pred_check
      _
    $region3: #{tpu_custom_call.1} parent=1 // pred_check_branch
      %16 = sbr.rel (0) target = $region5
    $region4: #{tpu_custom_call.1} parent=1 // pred_region
      _
    $region5: #{tpu_custom_call.1} parent=1 // pred_fallthru
      _
    // Predicated region
    $region6: #{tpu_custom_call.1} parent=1 // pred_check
      _
    $region7: #{tpu_custom_call.1} parent=1 // pred_check_branch
      %18 = sbr.rel (0) target = $region9
    $region8: #{tpu_custom_call.1} parent=1 // pred_region
      %s20 = ssub.s32 2048, 2048
      %21 = vsyncadd [#allocation4], %s20
      %s22 = sshll.u32 [#allocation3], 4
      %s23 = int_to_ptr.vmem [resolvable:$true] %s22
      %28 = dma.hbm_to_vmem [thread:$0]  %s1, 2048, %s23, [#allocation4], 128, 128, 8
    $region9: #{tpu_custom_call.1} parent=1 // pred_fallthru
      _
    // Predicated region
    $region10: #{tpu_custom_call.1} parent=1 // pred_check
      _
    $region11: #{tpu_custom_call.1} parent=1 // pred_check_branch
      %30 = sbr.rel (0) target = $region13
    $region12: #{tpu_custom_call.1} parent=1 // pred_region
      %s32 = ssub.s32 2048, 2048
      %33 = vsyncadd [#allocation7], %s32
      %s34 = sshll.u32 [#allocation6], 4
      %s35 = int_to_ptr.vmem [resolvable:$true] %s34
      %40 = dma.hbm_to_vmem [thread:$0]  %s2, 2048, %s35, [#allocation7], 128, 128, 8
    $region13: #{tpu_custom_call.1} parent=1 // pred_fallthru
      _
    // Predicated region
    $region14: #{tpu_custom_call.1} parent=1 // pred_check
      _
    $region15: #{tpu_custom_call.1} parent=1 // pred_check_branch
      %42 = sbr.rel (0) target = $region17
    $region16: #{tpu_custom_call.1} parent=1 // pred_region
      _
    $region17: #{tpu_custom_call.1} parent=1 // pred_fallthru
      _
    // Predicated region
    $region18: #{tpu_custom_call.1} parent=1 // pred_check
      _
    $region19: #{tpu_custom_call.1} parent=1 // pred_check_branch
      %44 = sbr.rel (0) target = $region21
    $region20: #{tpu_custom_call.1} parent=1 // pred_region
      %45 = dma.done [#allocation4], 2048
    $region21: #{tpu_custom_call.1} parent=1 // pred_fallthru
      _
    // Predicated region
    $region22: #{tpu_custom_call.1} parent=1 // pred_check
      _
    $region23: #{tpu_custom_call.1} parent=1 // pred_check_branch
      %47 = sbr.rel (0) target = $region25
    $region24: #{tpu_custom_call.1} parent=1 // pred_region
      %48 = dma.done [#allocation7], 2048
    $region25: #{tpu_custom_call.1} parent=1 // pred_fallthru
      _
    %v49 = vld [vmem:[%s0] sm:$0xff]
    %v50 = vld [vmem:[%s0 + $0x8] sm:$0xff]
    %v51 = vld [vmem:[%s0 + $0x10] sm:$0xff]
    %v52 = vld [vmem:[%s0 + $0x18] sm:$0xff]
    %v53 = vld [vmem:[%s0 + $0x20] sm:$0xff]
    %v54 = vld [vmem:[%s0 + $0x28] sm:$0xff]
    %v55 = vld [vmem:[%s0 + $0x30] sm:$0xff]
    %v56 = vld [vmem:[%s0 + $0x38] sm:$0xff]
    %v57 = vld [vmem:[%s0 + $0x40] sm:$0xff]
    %v58 = vld [vmem:[%s0 + $0x48] sm:$0xff]
    %v59 = vld [vmem:[%s0 + $0x50] sm:$0xff]
    %v60 = vld [vmem:[%s0 + $0x58] sm:$0xff]
    %v61 = vld [vmem:[%s0 + $0x60] sm:$0xff]
    %v62 = vld [vmem:[%s0 + $0x68] sm:$0xff]
    %v63 = vld [vmem:[%s0 + $0x70] sm:$0xff]
    %v64 = vld [vmem:[%s0 + $0x78] sm:$0xff]
    %s65 = smul.u32 0, 128
    %s66 = scalar_lea.vmem [#allocation3], %s65
    %v67 = vld [vmem:[%s66] sm:$0xff]
    %v68 = vld [vmem:[%s66 + $0x8] sm:$0xff]
    %v69 = vld [vmem:[%s66 + $0x10] sm:$0xff]
    %v70 = vld [vmem:[%s66 + $0x18] sm:$0xff]
    %v71 = vld [vmem:[%s66 + $0x20] sm:$0xff]
    %v72 = vld [vmem:[%s66 + $0x28] sm:$0xff]
    %v73 = vld [vmem:[%s66 + $0x30] sm:$0xff]
    %v74 = vld [vmem:[%s66 + $0x38] sm:$0xff]
    %v75 = vld [vmem:[%s66 + $0x40] sm:$0xff]
    %v76 = vld [vmem:[%s66 + $0x48] sm:$0xff]
    %v77 = vld [vmem:[%s66 + $0x50] sm:$0xff]
    %v78 = vld [vmem:[%s66 + $0x58] sm:$0xff]
    %v79 = vld [vmem:[%s66 + $0x60] sm:$0xff]
    %v80 = vld [vmem:[%s66 + $0x68] sm:$0xff]
    %v81 = vld [vmem:[%s66 + $0x70] sm:$0xff]
    %v82 = vld [vmem:[%s66 + $0x78] sm:$0xff]
    %83 = vmatprep.subr.mxu0 0.0
    %84 = vmatpush1.msra.mxu0 %v67
    %85 = vmatprep.subr.mxu0 0.0
    %86 = vmatpush1.msra.mxu0 %v68
    %87 = vmatprep.subr.mxu0 0.0
    %88 = vmatpush1.msra.mxu0 %v69
    %89 = vmatprep.subr.mxu0 0.0
    %90 = vmatpush1.msra.mxu0 %v70
    %91 = vmatprep.subr.mxu0 0.0
    %92 = vmatpush1.msra.mxu0 %v71
    %93 = vmatprep.subr.mxu0 0.0
    %94 = vmatpush1.msra.mxu0 %v72
    %95 = vmatprep.subr.mxu0 0.0
    %96 = vmatpush1.msra.mxu0 %v73
    %97 = vmatprep.subr.mxu0 0.0
    %98 = vmatpush1.msra.mxu0 %v74
    %99 = vmatprep.subr.mxu0 0.0
    %100 = vmatpush1.msra.mxu0 %v75
    %101 = vmatprep.subr.mxu0 0.0
    %102 = vmatpush1.msra.mxu0 %v76
    %103 = vmatprep.subr.mxu0 0.0
    %104 = vmatpush1.msra.mxu0 %v77
    %105 = vmatprep.subr.mxu0 0.0
    %106 = vmatpush1.msra.mxu0 %v78
    %107 = vmatprep.subr.mxu0 0.0
    %108 = vmatpush1.msra.mxu0 %v79
    %109 = vmatprep.subr.mxu0 0.0
    %110 = vmatpush1.msra.mxu0 %v80
    %111 = vmatprep.subr.mxu0 0.0
    %112 = vmatpush1.msra.mxu0 %v81
    %113 = vmatprep.subr.mxu0 0.0
    %114 = vmatpush1.msra.mxu0 %v82
    %115 = vmatprep.subr.mxu0 0.0
    %116 = vmatpush1.msra.mxu0 0.0
    %117 = vmatprep.subr.mxu0 0.0
    %118 = vmatpush1.msra.mxu0 0.0
    %119 = vmatprep.subr.mxu0 0.0
    %120 = vmatpush1.msra.mxu0 0.0
    %121 = vmatprep.subr.mxu0 0.0
    %122 = vmatpush1.msra.mxu0 0.0
    %123 = vmatprep.subr.mxu0 0.0
    %124 = vmatpush1.msra.mxu0 0.0
    %125 = vmatprep.subr.mxu0 0.0
    %126 = vmatpush1.msra.mxu0 0.0
    %127 = vmatprep.subr.mxu0 0.0
    %128 = vmatpush1.msra.mxu0 0.0
    %129 = vmatprep.subr.mxu0 0.0
    %130 = vmatpush1.msra.mxu0 0.0
    %131 = vmatprep.subr.mxu0 0.0
    %132 = vmatpush1.msra.mxu0 0.0
    %133 = vmatprep.subr.mxu0 0.0
    %134 = vmatpush1.msra.mxu0 0.0
    %135 = vmatprep.subr.mxu0 0.0
    %136 = vmatpush1.msra.mxu0 0.0
    %137 = vmatprep.subr.mxu0 0.0
    %138 = vmatpush1.msra.mxu0 0.0
    %139 = vmatprep.subr.mxu0 0.0
    %140 = vmatpush1.msra.mxu0 0.0
    %141 = vmatprep.subr.mxu0 0.0
    %142 = vmatpush1.msra.mxu0 0.0
    %143 = vmatprep.subr.mxu0 0.0
    %144 = vmatpush1.msra.mxu0 0.0
    %145 = vmatprep.subr.mxu0 0.0
    %146 = vmatpush1.msra.mxu0 0.0
    %147 = vmatprep.mubr.f32.mxu0 0.0
    %148 = vmatmul.mubr.f32.gmra.mrb[0].mxu0 %v49
    %v149 = vpop.f32.mrb[0].mxu0
    %v150 = vadd.f32 0.0, %v149
    %v151 = vpop.f32.mrb[0].mxu0
    %152 = vmatprep.mubr.f32.mxu0 0.0
    %153 = vmatmul.mubr.f32.gmra.mrb[0].mxu0 %v50
    %v154 = vpop.f32.mrb[0].mxu0
    %v155 = vadd.f32 0.0, %v154
    %v156 = vpop.f32.mrb[0].mxu0
    %157 = vmatprep.mubr.f32.mxu0 0.0
    %158 = vmatmul.mubr.f32.gmra.mrb[0].mxu0 %v51
    %v159 = vpop.f32.mrb[0].mxu0
    %v160 = vadd.f32 0.0, %v159
    %v161 = vpop.f32.mrb[0].mxu0
    %162 = vmatprep.mubr.f32.mxu0 0.0
    %163 = vmatmul.mubr.f32.gmra.mrb[0].mxu0 %v52
    %v164 = vpop.f32.mrb[0].mxu0
    %v165 = vadd.f32 0.0, %v164
    %v166 = vpop.f32.mrb[0].mxu0
    %167 = vmatprep.mubr.f32.mxu0 0.0
    %168 = vmatmul.mubr.f32.gmra.mrb[0].mxu0 %v53
    %v169 = vpop.f32.mrb[0].mxu0
    %v170 = vadd.f32 0.0, %v169
    %v171 = vpop.f32.mrb[0].mxu0
    %172 = vmatprep.mubr.f32.mxu0 0.0
    %173 = vmatmul.mubr.f32.gmra.mrb[0].mxu0 %v54
    %v174 = vpop.f32.mrb[0].mxu0
    %v175 = vadd.f32 0.0, %v174
    %v176 = vpop.f32.mrb[0].mxu0
    %177 = vmatprep.mubr.f32.mxu0 0.0
    %178 = vmatmul.mubr.f32.gmra.mrb[0].mxu0 %v55
    %v179 = vpop.f32.mrb[0].mxu0
    %v180 = vadd.f32 0.0, %v179
    %v181 = vpop.f32.mrb[0].mxu0
    %182 = vmatprep.mubr.f32.mxu0 0.0
    %183 = vmatmul.mubr.f32.gmra.mrb[0].mxu0 %v56
    %v184 = vpop.f32.mrb[0].mxu0
    %v185 = vadd.f32 0.0, %v184
    %v186 = vpop.f32.mrb[0].mxu0
    %187 = vmatprep.mubr.f32.mxu0 0.0
    %188 = vmatmul.mubr.f32.gmra.mrb[0].mxu0 %v57
    %v189 = vpop.f32.mrb[0].mxu0
    %v190 = vadd.f32 0.0, %v189
    %v191 = vpop.f32.mrb[0].mxu0
    %192 = vmatprep.mubr.f32.mxu0 0.0
    %193 = vmatmul.mubr.f32.gmra.mrb[0].mxu0 %v58
    %v194 = vpop.f32.mrb[0].mxu0
    %v195 = vadd.f32 0.0, %v194
    %v196 = vpop.f32.mrb[0].mxu0
    %197 = vmatprep.mubr.f32.mxu0 0.0
    %198 = vmatmul.mubr.f32.gmra.mrb[0].mxu0 %v59
    %v199 = vpop.f32.mrb[0].mxu0
    %v200 = vadd.f32 0.0, %v199
    %v201 = vpop.f32.mrb[0].mxu0
    %202 = vmatprep.mubr.f32.mxu0 0.0
    %203 = vmatmul.mubr.f32.gmra.mrb[0].mxu0 %v60
    %v204 = vpop.f32.mrb[0].mxu0
    %v205 = vadd.f32 0.0, %v204
    %v206 = vpop.f32.mrb[0].mxu0
    %207 = vmatprep.mubr.f32.mxu0 0.0
    %208 = vmatmul.mubr.f32.gmra.mrb[0].mxu0 %v61
    %v209 = vpop.f32.mrb[0].mxu0
    %v210 = vadd.f32 0.0, %v209
    %v211 = vpop.f32.mrb[0].mxu0
    %212 = vmatprep.mubr.f32.mxu0 0.0
    %213 = vmatmul.mubr.f32.gmra.mrb[0].mxu0 %v62
    %v214 = vpop.f32.mrb[0].mxu0
    %v215 = vadd.f32 0.0, %v214
    %v216 = vpop.f32.mrb[0].mxu0
    %217 = vmatprep.mubr.f32.mxu0 0.0
    %218 = vmatmul.mubr.f32.gmra.mrb[0].mxu0 %v63
    %v219 = vpop.f32.mrb[0].mxu0
    %v220 = vadd.f32 0.0, %v219
    %v221 = vpop.f32.mrb[0].mxu0
    %222 = vmatprep.mubr.f32.mxu0 0.0
    %223 = vmatmul.mubr.f32.gmra.mrb[0].mxu0 %v64
    %v224 = vpop.f32.mrb[0].mxu0
    %v225 = vadd.f32 0.0, %v224
    %v226 = vpop.f32.mrb[0].mxu0
    %227 = vdwg.mxu0
    %p228 = scmp.eq.s32.totalorder 0, 0
    // Predicated region
    $region26: #{tpu_custom_call.1} parent=1 // pred_check
      %p229 = pneg %p228
    $region27: #{tpu_custom_call.1} parent=1 // pred_check_branch
      %231 = sbr.rel (%p229) target = $region29
    $region28: #{tpu_custom_call.1} parent=1 // pred_region
      %232 = vst [vmem:[#allocation2] sm:$0xff] %v150
      %233 = vst [vmem:[#allocation2 + $0x8] sm:$0xff] %v155
      %234 = vst [vmem:[#allocation2 + $0x10] sm:$0xff] %v160
      %235 = vst [vmem:[#allocation2 + $0x18] sm:$0xff] %v165
      %236 = vst [vmem:[#allocation2 + $0x20] sm:$0xff] %v170
      %237 = vst [vmem:[#allocation2 + $0x28] sm:$0xff] %v175
      %238 = vst [vmem:[#allocation2 + $0x30] sm:$0xff] %v180
      %239 = vst [vmem:[#allocation2 + $0x38] sm:$0xff] %v185
      %240 = vst [vmem:[#allocation2 + $0x40] sm:$0xff] %v190
      %241 = vst [vmem:[#allocation2 + $0x48] sm:$0xff] %v195
      %242 = vst [vmem:[#allocation2 + $0x50] sm:$0xff] %v200
      %243 = vst [vmem:[#allocation2 + $0x58] sm:$0xff] %v205
      %244 = vst [vmem:[#allocation2 + $0x60] sm:$0xff] %v210
      %245 = vst [vmem:[#allocation2 + $0x68] sm:$0xff] %v215
      %246 = vst [vmem:[#allocation2 + $0x70] sm:$0xff] %v220
      %247 = vst [vmem:[#allocation2 + $0x78] sm:$0xff] %v225
    $region29: #{tpu_custom_call.1} parent=1 // pred_fallthru
      _
    %p248 = scmp.gt.s32.totalorder 0, 0
    // Predicated region
    $region30: #{tpu_custom_call.1} parent=1 // pred_check
      %p249 = pneg %p248
    $region31: #{tpu_custom_call.1} parent=1 // pred_check_branch
      %251 = sbr.rel (%p249) target = $region33
    $region32: #{tpu_custom_call.1} parent=1 // pred_region
      %v252 = vld [vmem:[#allocation2] sm:$0xff]
      %v253 = vld [vmem:[#allocation2 + $0x8] sm:$0xff]
      %v254 = vld [vmem:[#allocation2 + $0x10] sm:$0xff]
      %v255 = vld [vmem:[#allocation2 + $0x18] sm:$0xff]
      %v256 = vld [vmem:[#allocation2 + $0x20] sm:$0xff]
      %v257 = vld [vmem:[#allocation2 + $0x28] sm:$0xff]
      %v258 = vld [vmem:[#allocation2 + $0x30] sm:$0xff]
      %v259 = vld [vmem:[#allocation2 + $0x38] sm:$0xff]
      %v260 = vld [vmem:[#allocation2 + $0x40] sm:$0xff]
      %v261 = vld [vmem:[#allocation2 + $0x48] sm:$0xff]
      %v262 = vld [vmem:[#allocation2 + $0x50] sm:$0xff]
      %v263 = vld [vmem:[#allocation2 + $0x58] sm:$0xff]
      %v264 = vld [vmem:[#allocation2 + $0x60] sm:$0xff]
      %v265 = vld [vmem:[#allocation2 + $0x68] sm:$0xff]
      %v266 = vld [vmem:[#allocation2 + $0x70] sm:$0xff]
      %v267 = vld [vmem:[#allocation2 + $0x78] sm:$0xff]
      %v268 = vadd.f32 %v252, %v150
      %v269 = vadd.f32 %v253, %v155
      %v270 = vadd.f32 %v254, %v160
      %v271 = vadd.f32 %v255, %v165
      %v272 = vadd.f32 %v256, %v170
      %v273 = vadd.f32 %v257, %v175
      %v274 = vadd.f32 %v258, %v180
      %v275 = vadd.f32 %v259, %v185
      %v276 = vadd.f32 %v260, %v190
      %v277 = vadd.f32 %v261, %v195
      %v278 = vadd.f32 %v262, %v200
      %v279 = vadd.f32 %v263, %v205
      %v280 = vadd.f32 %v264, %v210
      %v281 = vadd.f32 %v265, %v215
      %v282 = vadd.f32 %v266, %v220
      %v283 = vadd.f32 %v267, %v225
      %284 = vst [vmem:[#allocation2] sm:$0xff] %v268
      %285 = vst [vmem:[#allocation2 + $0x8] sm:$0xff] %v269
      %286 = vst [vmem:[#allocation2 + $0x10] sm:$0xff] %v270
      %287 = vst [vmem:[#allocation2 + $0x18] sm:$0xff] %v271
      %288 = vst [vmem:[#allocation2 + $0x20] sm:$0xff] %v272
      %289 = vst [vmem:[#allocation2 + $0x28] sm:$0xff] %v273
      %290 = vst [vmem:[#allocation2 + $0x30] sm:$0xff] %v274
      %291 = vst [vmem:[#allocation2 + $0x38] sm:$0xff] %v275
      %292 = vst [vmem:[#allocation2 + $0x40] sm:$0xff] %v276
      %293 = vst [vmem:[#allocation2 + $0x48] sm:$0xff] %v277
      %294 = vst [vmem:[#allocation2 + $0x50] sm:$0xff] %v278
      %295 = vst [vmem:[#allocation2 + $0x58] sm:$0xff] %v279
      %296 = vst [vmem:[#allocation2 + $0x60] sm:$0xff] %v280
      %297 = vst [vmem:[#allocation2 + $0x68] sm:$0xff] %v281
      %298 = vst [vmem:[#allocation2 + $0x70] sm:$0xff] %v282
      %299 = vst [vmem:[#allocation2 + $0x78] sm:$0xff] %v283
    $region33: #{tpu_custom_call.1} parent=1 // pred_fallthru
      _
    // Predicated region
    $region34: #{tpu_custom_call.1} parent=1 // pred_check
      %p300 = pneg %p228
    $region35: #{tpu_custom_call.1} parent=1 // pred_check_branch
      %302 = sbr.rel (%p300) target = $region37
    $region36: #{tpu_custom_call.1} parent=1 // pred_region
      %v303 = vld [vmem:[#allocation6] sm:$0xff]
      %v304 = vld [vmem:[#allocation6 + $0x8] sm:$0xff]
      %v305 = vld [vmem:[#allocation6 + $0x10] sm:$0xff]
      %v306 = vld [vmem:[#allocation6 + $0x18] sm:$0xff]
      %v307 = vld [vmem:[#allocation6 + $0x20] sm:$0xff]
      %v308 = vld [vmem:[#allocation6 + $0x28] sm:$0xff]
      %v309 = vld [vmem:[#allocation6 + $0x30] sm:$0xff]
      %v310 = vld [vmem:[#allocation6 + $0x38] sm:$0xff]
      %v311 = vld [vmem:[#allocation6 + $0x40] sm:$0xff]
      %v312 = vld [vmem:[#allocation6 + $0x48] sm:$0xff]
      %v313 = vld [vmem:[#allocation6 + $0x50] sm:$0xff]
      %v314 = vld [vmem:[#allocation6 + $0x58] sm:$0xff]
      %v315 = vld [vmem:[#allocation6 + $0x60] sm:$0xff]
      %v316 = vld [vmem:[#allocation6 + $0x68] sm:$0xff]
      %v317 = vld [vmem:[#allocation6 + $0x70] sm:$0xff]
      %v318 = vld [vmem:[#allocation6 + $0x78] sm:$0xff]
      %v319 = vlaneseq
      %v320 = vand.u32 %v319, 127
      %vm321 = vcmp.ge.s32.totalorder %v320, 32
      %vm322 = vcmp.lt.s32.totalorder %v320, 36
      %vm323 = vmand %vm321, %vm322
      %v324 = vld [vmem:[#allocation2] sm:$0xff]
      %v325 = vld [vmem:[#allocation2 + $0x8] sm:$0xff]
      %v326 = vld [vmem:[#allocation2 + $0x10] sm:$0xff]
      %v327 = vld [vmem:[#allocation2 + $0x18] sm:$0xff]
      %v328 = vld [vmem:[#allocation2 + $0x20] sm:$0xff]
      %v329 = vld [vmem:[#allocation2 + $0x28] sm:$0xff]
      %v330 = vld [vmem:[#allocation2 + $0x30] sm:$0xff]
      %v331 = vld [vmem:[#allocation2 + $0x38] sm:$0xff]
      %v332 = vld [vmem:[#allocation2 + $0x40] sm:$0xff]
      %v333 = vld [vmem:[#allocation2 + $0x48] sm:$0xff]
      %v334 = vld [vmem:[#allocation2 + $0x50] sm:$0xff]
      %v335 = vld [vmem:[#allocation2 + $0x58] sm:$0xff]
      %v336 = vld [vmem:[#allocation2 + $0x60] sm:$0xff]
      %v337 = vld [vmem:[#allocation2 + $0x68] sm:$0xff]
      %v338 = vld [vmem:[#allocation2 + $0x70] sm:$0xff]
      %v339 = vld [vmem:[#allocation2 + $0x78] sm:$0xff]
      %v340 = vld [vmem:[%s3] sm:$0xff]
      %v341 = vld [vmem:[%s3 + $0x8] sm:$0xff]
      %v342 = vld [vmem:[%s3 + $0x10] sm:$0xff]
      %v343 = vld [vmem:[%s3 + $0x18] sm:$0xff]
      %v344 = vld [vmem:[%s3 + $0x20] sm:$0xff]
      %v345 = vld [vmem:[%s3 + $0x28] sm:$0xff]
      %v346 = vld [vmem:[%s3 + $0x30] sm:$0xff]
      %v347 = vld [vmem:[%s3 + $0x38] sm:$0xff]
      %v348 = vld [vmem:[%s3 + $0x40] sm:$0xff]
      %v349 = vld [vmem:[%s3 + $0x48] sm:$0xff]
      %v350 = vld [vmem:[%s3 + $0x50] sm:$0xff]
      %v351 = vld [vmem:[%s3 + $0x58] sm:$0xff]
      %v352 = vld [vmem:[%s3 + $0x60] sm:$0xff]
      %v353 = vld [vmem:[%s3 + $0x68] sm:$0xff]
      %v354 = vld [vmem:[%s3 + $0x70] sm:$0xff]
      %v355 = vld [vmem:[%s3 + $0x78] sm:$0xff]
      %357 = vset.pattern.permute.xlu0 0
      %358 = vperm.xlu0 %357, %v340
      %v359 = vpop.permute.xlu0 %358
      %362 = vset.pattern.permute.xlu0 0
      %363 = vperm.xlu0 %362, %v341
      %v364 = vpop.permute.xlu0 %363
      %367 = vset.pattern.permute.xlu0 0
      %368 = vperm.xlu0 %367, %v342
      %v369 = vpop.permute.xlu0 %368
      %372 = vset.pattern.permute.xlu0 0
      %373 = vperm.xlu0 %372, %v343
      %v374 = vpop.permute.xlu0 %373
      %377 = vset.pattern.permute.xlu0 0
      %378 = vperm.xlu0 %377, %v344
      %v379 = vpop.permute.xlu0 %378
      %382 = vset.pattern.permute.xlu0 0
      %383 = vperm.xlu0 %382, %v345
      %v384 = vpop.permute.xlu0 %383
      %387 = vset.pattern.permute.xlu0 0
      %388 = vperm.xlu0 %387, %v346
      %v389 = vpop.permute.xlu0 %388
      %392 = vset.pattern.permute.xlu0 0
      %393 = vperm.xlu0 %392, %v347
      %v394 = vpop.permute.xlu0 %393
      %397 = vset.pattern.permute.xlu0 0
      %398 = vperm.xlu0 %397, %v348
      %v399 = vpop.permute.xlu0 %398
      %402 = vset.pattern.permute.xlu0 0
      %403 = vperm.xlu0 %402, %v349
      %v404 = vpop.permute.xlu0 %403
      %407 = vset.pattern.permute.xlu0 0
      %408 = vperm.xlu0 %407, %v350
      %v409 = vpop.permute.xlu0 %408
      %412 = vset.pattern.permute.xlu0 0
      %413 = vperm.xlu0 %412, %v351
      %v414 = vpop.permute.xlu0 %413
      %417 = vset.pattern.permute.xlu0 0
      %418 = vperm.xlu0 %417, %v352
      %v419 = vpop.permute.xlu0 %418
      %422 = vset.pattern.permute.xlu0 0
      %423 = vperm.xlu0 %422, %v353
      %v424 = vpop.permute.xlu0 %423
      %427 = vset.pattern.permute.xlu0 0
      %428 = vperm.xlu0 %427, %v354
      %v429 = vpop.permute.xlu0 %428
      %432 = vset.pattern.permute.xlu0 0
      %433 = vperm.xlu0 %432, %v355
      %v434 = vpop.permute.xlu0 %433
      %v436 = vmul.f32 %v324, %v359
      %v437 = vmul.f32 %v325, %v364
      %v438 = vmul.f32 %v326, %v369
      %v439 = vmul.f32 %v327, %v374
      %v440 = vmul.f32 %v328, %v379
      %v441 = vmul.f32 %v329, %v384
      %v442 = vmul.f32 %v330, %v389
      %v443 = vmul.f32 %v331, %v394
      %v444 = vmul.f32 %v332, %v399
      %v445 = vmul.f32 %v333, %v404
      %v446 = vmul.f32 %v334, %v409
      %v447 = vmul.f32 %v335, %v414
      %v448 = vmul.f32 %v336, %v419
      %v449 = vmul.f32 %v337, %v424
      %v450 = vmul.f32 %v338, %v429
      %v451 = vmul.f32 %v339, %v434
      %452 = vst [vmem:[#allocation9] sm:$0xff] %v436
      %453 = vst [vmem:[#allocation9 + $0x8] sm:$0xff] %v437
      %454 = vst [vmem:[#allocation9 + $0x10] sm:$0xff] %v438
      %455 = vst [vmem:[#allocation9 + $0x18] sm:$0xff] %v439
      %456 = vst [vmem:[#allocation9 + $0x20] sm:$0xff] %v440
      %457 = vst [vmem:[#allocation9 + $0x28] sm:$0xff] %v441
      %458 = vst [vmem:[#allocation9 + $0x30] sm:$0xff] %v442
      %459 = vst [vmem:[#allocation9 + $0x38] sm:$0xff] %v443
      %460 = vst [vmem:[#allocation9 + $0x40] sm:$0xff] %v444
      %461 = vst [vmem:[#allocation9 + $0x48] sm:$0xff] %v445
      %462 = vst [vmem:[#allocation9 + $0x50] sm:$0xff] %v446
      %463 = vst [vmem:[#allocation9 + $0x58] sm:$0xff] %v447
      %464 = vst [vmem:[#allocation9 + $0x60] sm:$0xff] %v448
      %465 = vst [vmem:[#allocation9 + $0x68] sm:$0xff] %v449
      %466 = vst [vmem:[#allocation9 + $0x70] sm:$0xff] %v450
      %467 = vst [vmem:[#allocation9 + $0x78] sm:$0xff] %v451
      %468 = vmatprep.subr.mxu0 0.0
      %469 = vmatpush1.msra.mxu0 %v303
      %470 = vmatprep.subr.mxu0 0.0
      %471 = vmatpush1.msra.mxu0 %v304
      %472 = vmatprep.subr.mxu0 0.0
      %473 = vmatpush1.msra.mxu0 %v305
      %474 = vmatprep.subr.mxu0 0.0
      %475 = vmatpush1.msra.mxu0 %v306
      %476 = vmatprep.subr.mxu0 0.0
      %477 = vmatpush1.msra.mxu0 %v307
      %478 = vmatprep.subr.mxu0 0.0
      %479 = vmatpush1.msra.mxu0 %v308
      %480 = vmatprep.subr.mxu0 0.0
      %481 = vmatpush1.msra.mxu0 %v309
      %482 = vmatprep.subr.mxu0 0.0
      %483 = vmatpush1.msra.mxu0 %v310
      %484 = vmatprep.subr.mxu0 0.0
      %485 = vmatpush1.msra.mxu0 %v311
      %486 = vmatprep.subr.mxu0 0.0
      %487 = vmatpush1.msra.mxu0 %v312
      %488 = vmatprep.subr.mxu0 0.0
      %489 = vmatpush1.msra.mxu0 %v313
      %490 = vmatprep.subr.mxu0 0.0
      %491 = vmatpush1.msra.mxu0 %v314
      %492 = vmatprep.subr.mxu0 0.0
      %493 = vmatpush1.msra.mxu0 %v315
      %494 = vmatprep.subr.mxu0 0.0
      %495 = vmatpush1.msra.mxu0 %v316
      %496 = vmatprep.subr.mxu0 0.0
      %497 = vmatpush1.msra.mxu0 %v317
      %498 = vmatprep.subr.mxu0 0.0
      %499 = vmatpush1.msra.mxu0 %v318
      %500 = vmatprep.subr.mxu0 0.0
      %501 = vmatpush1.msra.mxu0 0.0
      %502 = vmatprep.subr.mxu0 0.0
      %503 = vmatpush1.msra.mxu0 0.0
      %504 = vmatprep.subr.mxu0 0.0
      %505 = vmatpush1.msra.mxu0 0.0
      %506 = vmatprep.subr.mxu0 0.0
      %507 = vmatpush1.msra.mxu0 0.0
      %508 = vmatprep.subr.mxu0 0.0
      %509 = vmatpush1.msra.mxu0 0.0
      %510 = vmatprep.subr.mxu0 0.0
      %511 = vmatpush1.msra.mxu0 0.0
      %512 = vmatprep.subr.mxu0 0.0
      %513 = vmatpush1.msra.mxu0 0.0
      %514 = vmatprep.subr.mxu0 0.0
      %515 = vmatpush1.msra.mxu0 0.0
      %516 = vmatprep.subr.mxu0 0.0
      %517 = vmatpush1.msra.mxu0 0.0
      %518 = vmatprep.subr.mxu0 0.0
      %519 = vmatpush1.msra.mxu0 0.0
      %520 = vmatprep.subr.mxu0 0.0
      %521 = vmatpush1.msra.mxu0 0.0
      %522 = vmatprep.subr.mxu0 0.0
      %523 = vmatpush1.msra.mxu0 0.0
      %524 = vmatprep.subr.mxu0 0.0
      %525 = vmatpush1.msra.mxu0 0.0
      %526 = vmatprep.subr.mxu0 0.0
      %527 = vmatpush1.msra.mxu0 0.0
      %528 = vmatprep.subr.mxu0 0.0
      %529 = vmatpush1.msra.mxu0 0.0
      %530 = vmatprep.subr.mxu0 0.0
      %531 = vmatpush1.msra.mxu0 0.0
      %532 = vmatprep.mubr.f32.mxu0 0.0
      %533 = vmatmul.mubr.f32.gmra.mrb[0].mxu0 %v436
      %v534 = vpop.f32.mrb[0].mxu0
      %v535 = vadd.f32 0.0, %v534
      %v536 = vpop.f32.mrb[0].mxu0
      %537 = vmatprep.mubr.f32.mxu0 0.0
      %538 = vmatmul.mubr.f32.gmra.mrb[0].mxu0 %v437
      %v539 = vpop.f32.mrb[0].mxu0
      %v540 = vadd.f32 0.0, %v539
      %v541 = vpop.f32.mrb[0].mxu0
      %542 = vmatprep.mubr.f32.mxu0 0.0
      %543 = vmatmul.mubr.f32.gmra.mrb[0].mxu0 %v438
      %v544 = vpop.f32.mrb[0].mxu0
      %v545 = vadd.f32 0.0, %v544
      %v546 = vpop.f32.mrb[0].mxu0
      %547 = vmatprep.mubr.f32.mxu0 0.0
      %548 = vmatmul.mubr.f32.gmra.mrb[0].mxu0 %v439
      %v549 = vpop.f32.mrb[0].mxu0
      %v550 = vadd.f32 0.0, %v549
      %v551 = vpop.f32.mrb[0].mxu0
      %552 = vmatprep.mubr.f32.mxu0 0.0
      %553 = vmatmul.mubr.f32.gmra.mrb[0].mxu0 %v440
      %v554 = vpop.f32.mrb[0].mxu0
      %v555 = vadd.f32 0.0, %v554
      %v556 = vpop.f32.mrb[0].mxu0
      %557 = vmatprep.mubr.f32.mxu0 0.0
      %558 = vmatmul.mubr.f32.gmra.mrb[0].mxu0 %v441
      %v559 = vpop.f32.mrb[0].mxu0
      %v560 = vadd.f32 0.0, %v559
      %v561 = vpop.f32.mrb[0].mxu0
      %562 = vmatprep.mubr.f32.mxu0 0.0
      %563 = vmatmul.mubr.f32.gmra.mrb[0].mxu0 %v442
      %v564 = vpop.f32.mrb[0].mxu0
      %v565 = vadd.f32 0.0, %v564
      %v566 = vpop.f32.mrb[0].mxu0
      %567 = vmatprep.mubr.f32.mxu0 0.0
      %568 = vmatmul.mubr.f32.gmra.mrb[0].mxu0 %v443
      %v569 = vpop.f32.mrb[0].mxu0
      %v570 = vadd.f32 0.0, %v569
      %v571 = vpop.f32.mrb[0].mxu0
      %572 = vmatprep.mubr.f32.mxu0 0.0
      %573 = vmatmul.mubr.f32.gmra.mrb[0].mxu0 %v444
      %v574 = vpop.f32.mrb[0].mxu0
      %v575 = vadd.f32 0.0, %v574
      %v576 = vpop.f32.mrb[0].mxu0
      %577 = vmatprep.mubr.f32.mxu0 0.0
      %578 = vmatmul.mubr.f32.gmra.mrb[0].mxu0 %v445
      %v579 = vpop.f32.mrb[0].mxu0
      %v580 = vadd.f32 0.0, %v579
      %v581 = vpop.f32.mrb[0].mxu0
      %582 = vmatprep.mubr.f32.mxu0 0.0
      %583 = vmatmul.mubr.f32.gmra.mrb[0].mxu0 %v446
      %v584 = vpop.f32.mrb[0].mxu0
      %v585 = vadd.f32 0.0, %v584
      %v586 = vpop.f32.mrb[0].mxu0
      %587 = vmatprep.mubr.f32.mxu0 0.0
      %588 = vmatmul.mubr.f32.gmra.mrb[0].mxu0 %v447
      %v589 = vpop.f32.mrb[0].mxu0
      %v590 = vadd.f32 0.0, %v589
      %v591 = vpop.f32.mrb[0].mxu0
      %592 = vmatprep.mubr.f32.mxu0 0.0
      %593 = vmatmul.mubr.f32.gmra.mrb[0].mxu0 %v448
      %v594 = vpop.f32.mrb[0].mxu0
      %v595 = vadd.f32 0.0, %v594
      %v596 = vpop.f32.mrb[0].mxu0
      %597 = vmatprep.mubr.f32.mxu0 0.0
      %598 = vmatmul.mubr.f32.gmra.mrb[0].mxu0 %v449
      %v599 = vpop.f32.mrb[0].mxu0
      %v600 = vadd.f32 0.0, %v599
      %v601 = vpop.f32.mrb[0].mxu0
      %602 = vmatprep.mubr.f32.mxu0 0.0
      %603 = vmatmul.mubr.f32.gmra.mrb[0].mxu0 %v450
      %v604 = vpop.f32.mrb[0].mxu0
      %v605 = vadd.f32 0.0, %v604
      %v606 = vpop.f32.mrb[0].mxu0
      %607 = vmatprep.mubr.f32.mxu0 0.0
      %608 = vmatmul.mubr.f32.gmra.mrb[0].mxu0 %v451
      %v609 = vpop.f32.mrb[0].mxu0
      %v610 = vadd.f32 0.0, %v609
      %v611 = vpop.f32.mrb[0].mxu0
      %612 = vdwg.mxu0
      %v613 = vsel %vm323, %v535, -inf
      %v614 = vsel %vm323, %v540, -inf
      %v615 = vsel %vm323, %v545, -inf
      %v616 = vsel %vm323, %v550, -inf
      %v617 = vsel %vm323, %v555, -inf
      %v618 = vsel %vm323, %v560, -inf
      %v619 = vsel %vm323, %v565, -inf
      %v620 = vsel %vm323, %v570, -inf
      %v621 = vsel %vm323, %v575, -inf
      %v622 = vsel %vm323, %v580, -inf
      %v623 = vsel %vm323, %v585, -inf
      %v624 = vsel %vm323, %v590, -inf
      %v625 = vsel %vm323, %v595, -inf
      %v626 = vsel %vm323, %v600, -inf
      %v627 = vsel %vm323, %v605, -inf
      %v628 = vsel %vm323, %v610, -inf
      %629 = vmax.xlane.f32.xlu0 %v613
      %v630 = vpop.xlane.xlu0 %629
      %631 = vmax.xlane.f32.xlu0 %v614
      %v632 = vpop.xlane.xlu0 %631
      %633 = vmax.xlane.f32.xlu0 %v615
      %v634 = vpop.xlane.xlu0 %633
      %635 = vmax.xlane.f32.xlu0 %v616
      %v636 = vpop.xlane.xlu0 %635
      %637 = vmax.xlane.f32.xlu0 %v617
      %v638 = vpop.xlane.xlu0 %637
      %639 = vmax.xlane.f32.xlu0 %v618
      %v640 = vpop.xlane.xlu0 %639
      %641 = vmax.xlane.f32.xlu0 %v619
      %v642 = vpop.xlane.xlu0 %641
      %643 = vmax.xlane.f32.xlu0 %v620
      %v644 = vpop.xlane.xlu0 %643
      %645 = vmax.xlane.f32.xlu0 %v621
      %v646 = vpop.xlane.xlu0 %645
      %647 = vmax.xlane.f32.xlu0 %v622
      %v648 = vpop.xlane.xlu0 %647
      %649 = vmax.xlane.f32.xlu0 %v623
      %v650 = vpop.xlane.xlu0 %649
      %651 = vmax.xlane.f32.xlu0 %v624
      %v652 = vpop.xlane.xlu0 %651
      %653 = vmax.xlane.f32.xlu0 %v625
      %v654 = vpop.xlane.xlu0 %653
      %655 = vmax.xlane.f32.xlu0 %v626
      %v656 = vpop.xlane.xlu0 %655
      %657 = vmax.xlane.f32.xlu0 %v627
      %v658 = vpop.xlane.xlu0 %657
      %659 = vmax.xlane.f32.xlu0 %v628
      %v660 = vpop.xlane.xlu0 %659
      %vm661 = vcmp.eq.f32.partialorder %v613, %v630
      %vm662 = vcmp.eq.f32.partialorder %v614, %v632
      %vm663 = vcmp.eq.f32.partialorder %v615, %v634
      %vm664 = vcmp.eq.f32.partialorder %v616, %v636
      %vm665 = vcmp.eq.f32.partialorder %v617, %v638
      %vm666 = vcmp.eq.f32.partialorder %v618, %v640
      %vm667 = vcmp.eq.f32.partialorder %v619, %v642
      %vm668 = vcmp.eq.f32.partialorder %v620, %v644
      %vm669 = vcmp.eq.f32.partialorder %v621, %v646
      %vm670 = vcmp.eq.f32.partialorder %v622, %v648
      %vm671 = vcmp.eq.f32.partialorder %v623, %v650
      %vm672 = vcmp.eq.f32.partialorder %v624, %v652
      %vm673 = vcmp.eq.f32.partialorder %v625, %v654
      %vm674 = vcmp.eq.f32.partialorder %v626, %v656
      %vm675 = vcmp.eq.f32.partialorder %v627, %v658
      %vm676 = vcmp.eq.f32.partialorder %v628, %v660
      %vm677 = vmand %vm661, %vm323
      %vm678 = vmand %vm662, %vm323
      %vm679 = vmand %vm663, %vm323
      %vm680 = vmand %vm664, %vm323
      %vm681 = vmand %vm665, %vm323
      %vm682 = vmand %vm666, %vm323
      %vm683 = vmand %vm667, %vm323
      %vm684 = vmand %vm668, %vm323
      %vm685 = vmand %vm669, %vm323
      %vm686 = vmand %vm670, %vm323
      %vm687 = vmand %vm671, %vm323
      %vm688 = vmand %vm672, %vm323
      %vm689 = vmand %vm673, %vm323
      %vm690 = vmand %vm674, %vm323
      %vm691 = vmand %vm675, %vm323
      %vm692 = vmand %vm676, %vm323
      %v693 = vsub.s32 %v320, 32
      %v694 = vsel %vm677, %v693, 4
      %v695 = vsel %vm678, %v693, 4
      %v696 = vsel %vm679, %v693, 4
      %v697 = vsel %vm680, %v693, 4
      %v698 = vsel %vm681, %v693, 4
      %v699 = vsel %vm682, %v693, 4
      %v700 = vsel %vm683, %v693, 4
      %v701 = vsel %vm684, %v693, 4
      %v702 = vsel %vm685, %v693, 4
      %v703 = vsel %vm686, %v693, 4
      %v704 = vsel %vm687, %v693, 4
      %v705 = vsel %vm688, %v693, 4
      %v706 = vsel %vm689, %v693, 4
      %v707 = vsel %vm690, %v693, 4
      %v708 = vsel %vm691, %v693, 4
      %v709 = vsel %vm692, %v693, 4
      %v710 = vand.u32 %v694, 65535
      %v711 = vshra.s32 %v694, 16
      %v712 = vcvt.s32.f32 %v710
      %v713 = vcvt.s32.f32 %v711
      %714 = vmin.xlane.f32.xlu0 %v713
      %v715 = vpop.xlane.xlu0 %714
      %vm716 = vcmp.eq.f32.partialorder %v713, %v715
      %v717 = vsel %vm716, %v712, inf
      %718 = vmin.xlane.f32.xlu0 %v717
      %v719 = vpop.xlane.xlu0 %718
      %v720 = vcvt.f32.s32 %v719
      %v721 = vcvt.f32.s32 %v715
      %v722 = vshll.u32 %v721, 16
      %v723 = vadd.s32 %v722, %v720
      %v724 = vand.u32 %v695, 65535
      %v725 = vshra.s32 %v695, 16
      %v726 = vcvt.s32.f32 %v724
      %v727 = vcvt.s32.f32 %v725
      %728 = vmin.xlane.f32.xlu0 %v727
      %v729 = vpop.xlane.xlu0 %728
      %vm730 = vcmp.eq.f32.partialorder %v727, %v729
      %v731 = vsel %vm730, %v726, inf
      %732 = vmin.xlane.f32.xlu0 %v731
      %v733 = vpop.xlane.xlu0 %732
      %v734 = vcvt.f32.s32 %v733
      %v735 = vcvt.f32.s32 %v729
      %v736 = vshll.u32 %v735, 16
      %v737 = vadd.s32 %v736, %v734
      %v738 = vand.u32 %v696, 65535
      %v739 = vshra.s32 %v696, 16
      %v740 = vcvt.s32.f32 %v738
      %v741 = vcvt.s32.f32 %v739
      %742 = vmin.xlane.f32.xlu0 %v741
      %v743 = vpop.xlane.xlu0 %742
      %vm744 = vcmp.eq.f32.partialorder %v741, %v743
      %v745 = vsel %vm744, %v740, inf
      %746 = vmin.xlane.f32.xlu0 %v745
      %v747 = vpop.xlane.xlu0 %746
      %v748 = vcvt.f32.s32 %v747
      %v749 = vcvt.f32.s32 %v743
      %v750 = vshll.u32 %v749, 16
      %v751 = vadd.s32 %v750, %v748
      %v752 = vand.u32 %v697, 65535
      %v753 = vshra.s32 %v697, 16
      %v754 = vcvt.s32.f32 %v752
      %v755 = vcvt.s32.f32 %v753
      %756 = vmin.xlane.f32.xlu0 %v755
      %v757 = vpop.xlane.xlu0 %756
      %vm758 = vcmp.eq.f32.partialorder %v755, %v757
      %v759 = vsel %vm758, %v754, inf
      %760 = vmin.xlane.f32.xlu0 %v759
      %v761 = vpop.xlane.xlu0 %760
      %v762 = vcvt.f32.s32 %v761
      %v763 = vcvt.f32.s32 %v757
      %v764 = vshll.u32 %v763, 16
      %v765 = vadd.s32 %v764, %v762
      %v766 = vand.u32 %v698, 65535
      %v767 = vshra.s32 %v698, 16
      %v768 = vcvt.s32.f32 %v766
      %v769 = vcvt.s32.f32 %v767
      %770 = vmin.xlane.f32.xlu0 %v769
      %v771 = vpop.xlane.xlu0 %770
      %vm772 = vcmp.eq.f32.partialorder %v769, %v771
      %v773 = vsel %vm772, %v768, inf
      %774 = vmin.xlane.f32.xlu0 %v773
      %v775 = vpop.xlane.xlu0 %774
      %v776 = vcvt.f32.s32 %v775
      %v777 = vcvt.f32.s32 %v771
      %v778 = vshll.u32 %v777, 16
      %v779 = vadd.s32 %v778, %v776
      %v780 = vand.u32 %v699, 65535
      %v781 = vshra.s32 %v699, 16
      %v782 = vcvt.s32.f32 %v780
      %v783 = vcvt.s32.f32 %v781
      %784 = vmin.xlane.f32.xlu0 %v783
      %v785 = vpop.xlane.xlu0 %784
      %vm786 = vcmp.eq.f32.partialorder %v783, %v785
      %v787 = vsel %vm786, %v782, inf
      %788 = vmin.xlane.f32.xlu0 %v787
      %v789 = vpop.xlane.xlu0 %788
      %v790 = vcvt.f32.s32 %v789
      %v791 = vcvt.f32.s32 %v785
      %v792 = vshll.u32 %v791, 16
      %v793 = vadd.s32 %v792, %v790
      %v794 = vand.u32 %v700, 65535
      %v795 = vshra.s32 %v700, 16
      %v796 = vcvt.s32.f32 %v794
      %v797 = vcvt.s32.f32 %v795
      %798 = vmin.xlane.f32.xlu0 %v797
      %v799 = vpop.xlane.xlu0 %798
      %vm800 = vcmp.eq.f32.partialorder %v797, %v799
      %v801 = vsel %vm800, %v796, inf
      %802 = vmin.xlane.f32.xlu0 %v801
      %v803 = vpop.xlane.xlu0 %802
      %v804 = vcvt.f32.s32 %v803
      %v805 = vcvt.f32.s32 %v799
      %v806 = vshll.u32 %v805, 16
      %v807 = vadd.s32 %v806, %v804
      %v808 = vand.u32 %v701, 65535
      %v809 = vshra.s32 %v701, 16
      %v810 = vcvt.s32.f32 %v808
      %v811 = vcvt.s32.f32 %v809
      %812 = vmin.xlane.f32.xlu0 %v811
      %v813 = vpop.xlane.xlu0 %812
      %vm814 = vcmp.eq.f32.partialorder %v811, %v813
      %v815 = vsel %vm814, %v810, inf
      %816 = vmin.xlane.f32.xlu0 %v815
      %v817 = vpop.xlane.xlu0 %816
      %v818 = vcvt.f32.s32 %v817
      %v819 = vcvt.f32.s32 %v813
      %v820 = vshll.u32 %v819, 16
      %v821 = vadd.s32 %v820, %v818
      %v822 = vand.u32 %v702, 65535
      %v823 = vshra.s32 %v702, 16
      %v824 = vcvt.s32.f32 %v822
      %v825 = vcvt.s32.f32 %v823
      %826 = vmin.xlane.f32.xlu0 %v825
      %v827 = vpop.xlane.xlu0 %826
      %vm828 = vcmp.eq.f32.partialorder %v825, %v827
      %v829 = vsel %vm828, %v824, inf
      %830 = vmin.xlane.f32.xlu0 %v829
      %v831 = vpop.xlane.xlu0 %830
      %v832 = vcvt.f32.s32 %v831
      %v833 = vcvt.f32.s32 %v827
      %v834 = vshll.u32 %v833, 16
      %v835 = vadd.s32 %v834, %v832
      %v836 = vand.u32 %v703, 65535
      %v837 = vshra.s32 %v703, 16
      %v838 = vcvt.s32.f32 %v836
      %v839 = vcvt.s32.f32 %v837
      %840 = vmin.xlane.f32.xlu0 %v839
      %v841 = vpop.xlane.xlu0 %840
      %vm842 = vcmp.eq.f32.partialorder %v839, %v841
      %v843 = vsel %vm842, %v838, inf
      %844 = vmin.xlane.f32.xlu0 %v843
      %v845 = vpop.xlane.xlu0 %844
      %v846 = vcvt.f32.s32 %v845
      %v847 = vcvt.f32.s32 %v841
      %v848 = vshll.u32 %v847, 16
      %v849 = vadd.s32 %v848, %v846
      %v850 = vand.u32 %v704, 65535
      %v851 = vshra.s32 %v704, 16
      %v852 = vcvt.s32.f32 %v850
      %v853 = vcvt.s32.f32 %v851
      %854 = vmin.xlane.f32.xlu0 %v853
      %v855 = vpop.xlane.xlu0 %854
      %vm856 = vcmp.eq.f32.partialorder %v853, %v855
      %v857 = vsel %vm856, %v852, inf
      %858 = vmin.xlane.f32.xlu0 %v857
      %v859 = vpop.xlane.xlu0 %858
      %v860 = vcvt.f32.s32 %v859
      %v861 = vcvt.f32.s32 %v855
      %v862 = vshll.u32 %v861, 16
      %v863 = vadd.s32 %v862, %v860
      %v864 = vand.u32 %v705, 65535
      %v865 = vshra.s32 %v705, 16
      %v866 = vcvt.s32.f32 %v864
      %v867 = vcvt.s32.f32 %v865
      %868 = vmin.xlane.f32.xlu0 %v867
      %v869 = vpop.xlane.xlu0 %868
      %vm870 = vcmp.eq.f32.partialorder %v867, %v869
      %v871 = vsel %vm870, %v866, inf
      %872 = vmin.xlane.f32.xlu0 %v871
      %v873 = vpop.xlane.xlu0 %872
      %v874 = vcvt.f32.s32 %v873
      %v875 = vcvt.f32.s32 %v869
      %v876 = vshll.u32 %v875, 16
      %v877 = vadd.s32 %v876, %v874
      %v878 = vand.u32 %v706, 65535
      %v879 = vshra.s32 %v706, 16
      %v880 = vcvt.s32.f32 %v878
      %v881 = vcvt.s32.f32 %v879
      %882 = vmin.xlane.f32.xlu0 %v881
      %v883 = vpop.xlane.xlu0 %882
      %vm884 = vcmp.eq.f32.partialorder %v881, %v883
      %v885 = vsel %vm884, %v880, inf
      %886 = vmin.xlane.f32.xlu0 %v885
      %v887 = vpop.xlane.xlu0 %886
      %v888 = vcvt.f32.s32 %v887
      %v889 = vcvt.f32.s32 %v883
      %v890 = vshll.u32 %v889, 16
      %v891 = vadd.s32 %v890, %v888
      %v892 = vand.u32 %v707, 65535
      %v893 = vshra.s32 %v707, 16
      %v894 = vcvt.s32.f32 %v892
      %v895 = vcvt.s32.f32 %v893
      %896 = vmin.xlane.f32.xlu0 %v895
      %v897 = vpop.xlane.xlu0 %896
      %vm898 = vcmp.eq.f32.partialorder %v895, %v897
      %v899 = vsel %vm898, %v894, inf
      %900 = vmin.xlane.f32.xlu0 %v899
      %v901 = vpop.xlane.xlu0 %900
      %v902 = vcvt.f32.s32 %v901
      %v903 = vcvt.f32.s32 %v897
      %v904 = vshll.u32 %v903, 16
      %v905 = vadd.s32 %v904, %v902
      %v906 = vand.u32 %v708, 65535
      %v907 = vshra.s32 %v708, 16
      %v908 = vcvt.s32.f32 %v906
      %v909 = vcvt.s32.f32 %v907
      %910 = vmin.xlane.f32.xlu0 %v909
      %v911 = vpop.xlane.xlu0 %910
      %vm912 = vcmp.eq.f32.partialorder %v909, %v911
      %v913 = vsel %vm912, %v908, inf
      %914 = vmin.xlane.f32.xlu0 %v913
      %v915 = vpop.xlane.xlu0 %914
      %v916 = vcvt.f32.s32 %v915
      %v917 = vcvt.f32.s32 %v911
      %v918 = vshll.u32 %v917, 16
      %v919 = vadd.s32 %v918, %v916
      %v920 = vand.u32 %v709, 65535
      %v921 = vshra.s32 %v709, 16
      %v922 = vcvt.s32.f32 %v920
      %v923 = vcvt.s32.f32 %v921
      %924 = vmin.xlane.f32.xlu0 %v923
      %v925 = vpop.xlane.xlu0 %924
      %vm926 = vcmp.eq.f32.partialorder %v923, %v925
      %v927 = vsel %vm926, %v922, inf
      %928 = vmin.xlane.f32.xlu0 %v927
      %v929 = vpop.xlane.xlu0 %928
      %v930 = vcvt.f32.s32 %v929
      %v931 = vcvt.f32.s32 %v925
      %v932 = vshll.u32 %v931, 16
      %v933 = vadd.s32 %v932, %v930
      %v934 = vmul.u32 %v723, 8
      %v935 = vmul.u32 %v737, 8
      %v936 = vmul.u32 %v751, 8
      %v937 = vmul.u32 %v765, 8
      %v938 = vmul.u32 %v779, 8
      %v939 = vmul.u32 %v793, 8
      %v940 = vmul.u32 %v807, 8
      %v941 = vmul.u32 %v821, 8
      %v942 = vmul.u32 %v835, 8
      %v943 = vmul.u32 %v849, 8
      %v944 = vmul.u32 %v863, 8
      %v945 = vmul.u32 %v877, 8
      %v946 = vmul.u32 %v891, 8
      %v947 = vmul.u32 %v905, 8
      %v948 = vmul.u32 %v919, 8
      %v949 = vmul.u32 %v933, 8
      %vm950 = vcmp.ge.s32.totalorder %v320, %v934
      %vm951 = vcmp.ge.s32.totalorder %v320, %v935
      %vm952 = vcmp.ge.s32.totalorder %v320, %v936
      %vm953 = vcmp.ge.s32.totalorder %v320, %v937
      %vm954 = vcmp.ge.s32.totalorder %v320, %v938
      %vm955 = vcmp.ge.s32.totalorder %v320, %v939
      %vm956 = vcmp.ge.s32.totalorder %v320, %v940
      %vm957 = vcmp.ge.s32.totalorder %v320, %v941
      %vm958 = vcmp.ge.s32.totalorder %v320, %v942
      %vm959 = vcmp.ge.s32.totalorder %v320, %v943
      %vm960 = vcmp.ge.s32.totalorder %v320, %v944
      %vm961 = vcmp.ge.s32.totalorder %v320, %v945
      %vm962 = vcmp.ge.s32.totalorder %v320, %v946
      %vm963 = vcmp.ge.s32.totalorder %v320, %v947
      %vm964 = vcmp.ge.s32.totalorder %v320, %v948
      %vm965 = vcmp.ge.s32.totalorder %v320, %v949
      %v966 = vadd.s32 %v723, 1
      %v967 = vadd.s32 %v737, 1
      %v968 = vadd.s32 %v751, 1
      %v969 = vadd.s32 %v765, 1
      %v970 = vadd.s32 %v779, 1
      %v971 = vadd.s32 %v793, 1
      %v972 = vadd.s32 %v807, 1
      %v973 = vadd.s32 %v821, 1
      %v974 = vadd.s32 %v835, 1
      %v975 = vadd.s32 %v849, 1
      %v976 = vadd.s32 %v863, 1
      %v977 = vadd.s32 %v877, 1
      %v978 = vadd.s32 %v891, 1
      %v979 = vadd.s32 %v905, 1
      %v980 = vadd.s32 %v919, 1
      %v981 = vadd.s32 %v933, 1
      %v982 = vmul.u32 %v966, 8
      %v983 = vmul.u32 %v967, 8
      %v984 = vmul.u32 %v968, 8
      %v985 = vmul.u32 %v969, 8
      %v986 = vmul.u32 %v970, 8
      %v987 = vmul.u32 %v971, 8
      %v988 = vmul.u32 %v972, 8
      %v989 = vmul.u32 %v973, 8
      %v990 = vmul.u32 %v974, 8
      %v991 = vmul.u32 %v975, 8
      %v992 = vmul.u32 %v976, 8
      %v993 = vmul.u32 %v977, 8
      %v994 = vmul.u32 %v978, 8
      %v995 = vmul.u32 %v979, 8
      %v996 = vmul.u32 %v980, 8
      %v997 = vmul.u32 %v981, 8
      %vm998 = vcmp.lt.s32.totalorder %v320, %v982
      %vm999 = vcmp.lt.s32.totalorder %v320, %v983
      %vm1000 = vcmp.lt.s32.totalorder %v320, %v984
      %vm1001 = vcmp.lt.s32.totalorder %v320, %v985
      %vm1002 = vcmp.lt.s32.totalorder %v320, %v986
      %vm1003 = vcmp.lt.s32.totalorder %v320, %v987
      %vm1004 = vcmp.lt.s32.totalorder %v320, %v988
      %vm1005 = vcmp.lt.s32.totalorder %v320, %v989
      %vm1006 = vcmp.lt.s32.totalorder %v320, %v990
      %vm1007 = vcmp.lt.s32.totalorder %v320, %v991
      %vm1008 = vcmp.lt.s32.totalorder %v320, %v992
      %vm1009 = vcmp.lt.s32.totalorder %v320, %v993
      %vm1010 = vcmp.lt.s32.totalorder %v320, %v994
      %vm1011 = vcmp.lt.s32.totalorder %v320, %v995
      %vm1012 = vcmp.lt.s32.totalorder %v320, %v996
      %vm1013 = vcmp.lt.s32.totalorder %v320, %v997
      %vm1014 = vmand %vm950, %vm998
      %vm1015 = vmand %vm951, %vm999
      %vm1016 = vmand %vm952, %vm1000
      %vm1017 = vmand %vm953, %vm1001
      %vm1018 = vmand %vm954, %vm1002
      %vm1019 = vmand %vm955, %vm1003
      %vm1020 = vmand %vm956, %vm1004
      %vm1021 = vmand %vm957, %vm1005
      %vm1022 = vmand %vm958, %vm1006
      %vm1023 = vmand %vm959, %vm1007
      %vm1024 = vmand %vm960, %vm1008
      %vm1025 = vmand %vm961, %vm1009
      %vm1026 = vmand %vm962, %vm1010
      %vm1027 = vmand %vm963, %vm1011
      %vm1028 = vmand %vm964, %vm1012
      %vm1029 = vmand %vm965, %vm1013
      %v1030 = vsel %vm1014, %v535, 0.0
      %v1031 = vsel %vm1015, %v540, 0.0
      %v1032 = vsel %vm1016, %v545, 0.0
      %v1033 = vsel %vm1017, %v550, 0.0
      %v1034 = vsel %vm1018, %v555, 0.0
      %v1035 = vsel %vm1019, %v560, 0.0
      %v1036 = vsel %vm1020, %v565, 0.0
      %v1037 = vsel %vm1021, %v570, 0.0
      %v1038 = vsel %vm1022, %v575, 0.0
      %v1039 = vsel %vm1023, %v580, 0.0
      %v1040 = vsel %vm1024, %v585, 0.0
      %v1041 = vsel %vm1025, %v590, 0.0
      %v1042 = vsel %vm1026, %v595, 0.0
      %v1043 = vsel %vm1027, %v600, 0.0
      %v1044 = vsel %vm1028, %v605, 0.0
      %v1045 = vsel %vm1029, %v610, 0.0
      %1046 = vst [vmem:[#allocation8] sm:$0xff] %v1030
      %1047 = vst [vmem:[#allocation8 + $0x8] sm:$0xff] %v1031
      %1048 = vst [vmem:[#allocation8 + $0x10] sm:$0xff] %v1032
      %1049 = vst [vmem:[#allocation8 + $0x18] sm:$0xff] %v1033
      %1050 = vst [vmem:[#allocation8 + $0x20] sm:$0xff] %v1034
      %1051 = vst [vmem:[#allocation8 + $0x28] sm:$0xff] %v1035
      %1052 = vst [vmem:[#allocation8 + $0x30] sm:$0xff] %v1036
      %1053 = vst [vmem:[#allocation8 + $0x38] sm:$0xff] %v1037
      %1054 = vst [vmem:[#allocation8 + $0x40] sm:$0xff] %v1038
      %1055 = vst [vmem:[#allocation8 + $0x48] sm:$0xff] %v1039
      %1056 = vst [vmem:[#allocation8 + $0x50] sm:$0xff] %v1040
      %1057 = vst [vmem:[#allocation8 + $0x58] sm:$0xff] %v1041
      %1058 = vst [vmem:[#allocation8 + $0x60] sm:$0xff] %v1042
      %1059 = vst [vmem:[#allocation8 + $0x68] sm:$0xff] %v1043
      %1060 = vst [vmem:[#allocation8 + $0x70] sm:$0xff] %v1044
      %1061 = vst [vmem:[#allocation8 + $0x78] sm:$0xff] %v1045
    $region37: #{tpu_custom_call.1} parent=1 // pred_fallthru
      _
    // Predicated region
    $region38: #{tpu_custom_call.1} parent=1 // pred_check
      _
    $region39: #{tpu_custom_call.1} parent=1 // pred_check_branch
      %1063 = sbr.rel (0) target = $region41
    $region40: #{tpu_custom_call.1} parent=1 // pred_region
      %s1065 = ssub.s32 2048, 2048
      %1066 = vsyncadd [#allocation5], %s1065
      %s1067 = sshll.u32 [#allocation8], 4
      %s1068 = int_to_ptr.vmem [resolvable:$true] %s1067
      %1073 = dma.vmem_to_hbm [thread:$0]  %s1068, 2048, %s4, [#allocation5], 128, 128, 8
    $region41: #{tpu_custom_call.1} parent=1 // pred_fallthru
      _
    // Predicated region
    $region42: #{tpu_custom_call.1} parent=1 // pred_check
      _
    $region43: #{tpu_custom_call.1} parent=1 // pred_check_branch
      %1075 = sbr.rel (0) target = $region45
    $region44: #{tpu_custom_call.1} parent=1 // pred_region
      %s1077 = ssub.s32 2048, 2048
      %1078 = vsyncadd [#allocation10], %s1077
      %s1079 = sshll.u32 [#allocation9], 4
      %s1080 = int_to_ptr.vmem [resolvable:$true] %s1079
      %1085 = dma.vmem_to_hbm [thread:$0]  %s1080, 2048, %s5, [#allocation10], 128, 128, 8
    $region45: #{tpu_custom_call.1} parent=1 // pred_fallthru
      _
    // Predicated region
    $region46: #{tpu_custom_call.1} parent=1 // pred_check
      _
    $region47: #{tpu_custom_call.1} parent=1 // pred_check_branch
      %1087 = sbr.rel (0) target = $region49
    $region48: #{tpu_custom_call.1} parent=1 // pred_region
      %1088 = dma.done [#allocation5], 2048
    $region49: #{tpu_custom_call.1} parent=1 // pred_fallthru
      _
    // Predicated region
    $region50: #{tpu_custom_call.1} parent=1 // pred_check
      _
    $region51: #{tpu_custom_call.1} parent=1 // pred_check_branch
      %1090 = sbr.rel (0) target = $region53
    $region52: #{tpu_custom_call.1} parent=1 // pred_region
      %1091 = dma.done [#allocation10], 2048
    $region53: #{tpu_custom_call.1} parent=1 // pred_fallthru
      _
    %1092 = vsyncpa [#allocation4], 1
    %1093 = vsyncpa [#allocation7], 1
    %1094 = vsyncpa [#allocation5], 1
    %1095 = vsyncpa [#allocation10], 1

</llo_original>
